<compile_context>
chip_gen: v7x
topology: tpu7x:2x2x1
jax: 0.10.0
libtpu: 0.0.40
codegen_flags: <defaults>
</compile_context>

<pallas_src>
import functools

import jax
import jax.numpy as jnp
from jax.experimental import pallas as pl
from jax.experimental.pallas import tpu as pltpu


_WPAD = 8  # left halo width along W (sublane axis); 8 keeps the interior store aligned.


def _dwconv3x3_kernel(x_ref, w_ref, o_ref, pad_ref, *, H, W, cin, wpad):
    """Depthwise 3x3, stride 1, pad 1, over one (1, H, W, ct) NHWC tile.

    x_ref:   (1, H, W, ct)        input tile (un-padded)
    w_ref:   (9, ct)              per-channel taps, row index = kh*3 + kw
    o_ref:   (1, H, W, ct)        output tile
    pad_ref: (H+2, wpad+W+1, cin) VMEM halo scratch (zero border)
    """
    ct = o_ref.shape[-1]

    # Zero the halo scratch once per grid step; only the interior is ever
    # overwritten below, so the border stays zero.
    pad_ref[...] = jnp.zeros_like(pad_ref)

    # Static (unrolled) loop over 128-lane channel sub-chunks keeps vreg
    # pressure bounded even when ct is large (e.g. 1152).
    for c0 in range(0, ct, cin):
        cs = slice(c0, c0 + cin)

        # Place this chunk at rows [1:H+1], cols [wpad:wpad+W] (aligned start).
        pad_ref[1:H + 1, wpad:wpad + W, :] = x_ref[0, :, :, cs]

        w = w_ref[:, cs].astype(jnp.float32)                      # (9, cin)
        acc = jnp.zeros((H, W, cin), jnp.float32)

        # Hoist the kw (sublane) shift out of the kh loop: 3 shifted window
        # loads, each reused for 3 kh offsets (leading-dim slicing is free).
        for kw in range(3):
            col0 = wpad - 1 + kw
            xw = pad_ref[:, col0:col0 + W, :].astype(jnp.float32)  # (H+2, W, cin)
            for kh in range(3):
                acc = acc + xw[kh:kh + H] * w[kh * 3 + kw][None, None, :]

        o_ref[0, :, :, cs] = acc.astype(o_ref.dtype)


def _pick_channel_tile(C):
    """Largest multiple-of-128 divisor of C that still leaves >=2 grid steps."""
    cands = [d for d in range(128, C + 1, 128) if C % d == 0]
    if not cands:
        return C  # C not a multiple of 128: single full-channel block.
    multi = [d for d in cands if C // d >= 2]
    return max(multi) if multi else max(cands)


def depthwise_conv3x3_nhwc(x_nhwc, w9c, *, channel_tile=None):
    """Depthwise 3x3 conv (stride 1, pad 1, no bias) on an NHWC tensor.

    x_nhwc: (N, H, W, C);  w9c: (9, C) with row index = kh*3 + kw.
    """
    N, H, W, C = x_nhwc.shape
    assert w9c.shape == (9, C)

    ct = channel_tile if channel_tile is not None else _pick_channel_tile(C)
    if C % ct != 0 or not (ct == C or ct % 128 == 0):
        raise ValueError(
            f"channel_tile={ct} must divide C={C} and be a multiple of 128 "
            f"(or equal C).")
    cin = 128 if (ct % 128 == 0) else ct   # in-kernel channel sub-chunk

    itemsize = jnp.dtype(x_nhwc.dtype).itemsize
    cost = pl.CostEstimate(
        flops=2 * 9 * N * C * H * W,
        transcendentals=0,
        bytes_accessed=(x_nhwc.size * itemsize
                        + w9c.size * jnp.dtype(w9c.dtype).itemsize
                        + N * H * W * C * itemsize),
    )

    kernel = functools.partial(_dwconv3x3_kernel, H=H, W=W, cin=cin, wpad=_WPAD)

    return pl.pallas_call(
        kernel,
        out_shape=jax.ShapeDtypeStruct((N, H, W, C), x_nhwc.dtype),
        grid_spec=pltpu.PrefetchScalarGridSpec(
            num_scalar_prefetch=0,
            grid=(N, C // ct),
            in_specs=[
                pl.BlockSpec((1, H, W, ct), lambda n, c: (n, 0, 0, c)),
                pl.BlockSpec((9, ct), lambda n, c: (0, c)),
            ],
            out_specs=pl.BlockSpec((1, H, W, ct), lambda n, c: (n, 0, 0, c)),
            scratch_shapes=[
                pltpu.VMEM((H + 2, _WPAD + W + 1, cin), x_nhwc.dtype),
            ],
        ),
        compiler_params=pltpu.CompilerParams(
            dimension_semantics=("parallel", "parallel")),
        cost_estimate=cost,
    )(x_nhwc, w9c)


def depthwise_conv3x3(x_nchw, w_oihw, *, channel_tile=None):
    """PyTorch-parity entry point: NCHW in / NCHW out.

    x_nchw: (N, C, H, W);  w_oihw: (C, 1, 3, 3)   (depthwise weight layout)
    """
    N, C, H, W = x_nchw.shape
    assert w_oihw.shape == (C, 1, 3, 3)

    # XLA glue: NCHW -> NHWC so channels land on the lane axis.
    # TODO(synk): run the surrounding model NHWC end-to-end and call
    # depthwise_conv3x3_nhwc directly to remove these two HBM round-trips.
    x_nhwc = jnp.transpose(x_nchw, (0, 2, 3, 1))
    w9c = jnp.transpose(w_oihw[:, 0, :, :], (1, 2, 0)).reshape(9, C)

    out_nhwc = depthwise_conv3x3_nhwc(x_nhwc, w9c, channel_tile=channel_tile)
    return jnp.transpose(out_nhwc, (0, 3, 1, 2))


if __name__ == "__main__":
    # Small shapes consistent with the module (depthwise 3x3 over 7x7 maps).
    # Original: N=1, C=3456, H=W=7.  C=512 here -> auto channel_tile=256
    # (2 parallel grid steps) with 2 inner 128-lane chunks, exercising the
    # grid tiling, the halo scratch and the in-kernel chunk loop.
    N, C, H, W = 1, 512, 7, 7
    key = jax.random.PRNGKey(0)
    kx, kw_ = jax.random.split(key)
    x = jax.random.normal(kx, (N, C, H, W), dtype=jnp.float32)
    w = jax.random.normal(kw_, (C, 1, 3, 3), dtype=jnp.float32) * 0.1

    out = jax.block_until_ready(depthwise_conv3x3(x, w))

    # Reference: plain JAX grouped (depthwise) convolution.
    ref = jax.lax.conv_general_dilated(
        x, w, window_strides=(1, 1), padding=((1, 1), (1, 1)),
        dimension_numbers=("NCHW", "OIHW", "NCHW"),
        feature_group_count=C)

    assert out.shape == (N, C, H, W)
    assert jnp.allclose(out, ref, atol=1e-4, rtol=1e-4)

    print("KERNEL_OK")
</pallas_src>

<mosaic_0001>
module attributes {stable_mosaic.version = 11 : i64} {
  func.func @_dwconv3x3_kernel(%arg0: i32, %arg1: i32, %arg2: memref<1x7x7x256xf32, #tpu.memory_space<vmem>>, %arg3: memref<9x256xf32, #tpu.memory_space<vmem>>, %arg4: memref<1x7x7x256xf32, #tpu.memory_space<vmem>>, %arg5: memref<9x16x128xf32, #tpu.memory_space<vmem>>) attributes {dimension_semantics = [#tpu.dimension_semantics<parallel>, #tpu.dimension_semantics<parallel>], iteration_bounds = array<i64: 1, 2>, scalar_prefetch = 0 : i64, scratch_operands = 1 : i64, tpu.core_type = #tpu.core_type<tc>, window_params = [{transform_indices = @transform_0, window_bounds = array<i64: 1, 7, 7, 256>}, {transform_indices = @transform_1, window_bounds = array<i64: 9, 256>}, {transform_indices = @transform_2, window_bounds = array<i64: 1, 7, 7, 256>}]} {
    %cst = arith.constant 0.000000e+00 : f32
    %0 = vector.broadcast %cst : f32 to vector<9x16x128xf32>
    %c0 = arith.constant 0 : index
    %c0_0 = arith.constant 0 : index
    %c0_1 = arith.constant 0 : index
    %1 = vector.load %arg5[%c0, %c0_0, %c0_1] : memref<9x16x128xf32, #tpu.memory_space<vmem>>, vector<9x16x128xf32>
    tpu.vector_store %arg5[%c0, %c0_0, %c0_1], %0 {strides = array<i32>} : memref<9x16x128xf32, #tpu.memory_space<vmem>>, vector<9x16x128xf32>,
    %c0_2 = arith.constant 0 : index
    %c0_3 = arith.constant 0 : index
    %c0_4 = arith.constant 0 : index
    %c0_5 = arith.constant 0 : index
    %2 = vector.load %arg2[%c0_2, %c0_3, %c0_4, %c0_5] : memref<1x7x7x256xf32, #tpu.memory_space<vmem>>, vector<1x7x7x128xf32>
    %3 = vector.shape_cast %2 : vector<1x7x7x128xf32> to vector<7x7x128xf32>
    %c1 = arith.constant 1 : index
    %c8 = arith.constant 8 : index
    %c0_6 = arith.constant 0 : index
    %4 = vector.load %arg5[%c1, %c8, %c0_6] : memref<9x16x128xf32, #tpu.memory_space<vmem>>, vector<7x7x128xf32>
    tpu.vector_store %arg5[%c1, %c8, %c0_6], %3 {strides = array<i32>} : memref<9x16x128xf32, #tpu.memory_space<vmem>>, vector<7x7x128xf32>,
    %c0_7 = arith.constant 0 : index
    %c0_8 = arith.constant 0 : index
    %5 = vector.load %arg3[%c0_7, %c0_8] : memref<9x256xf32, #tpu.memory_space<vmem>>, vector<9x128xf32>
    %cst_9 = arith.constant 0.000000e+00 : f32
    %6 = vector.broadcast %cst_9 : f32 to vector<7x7x128xf32>
    %c0_10 = arith.constant 0 : index
    %c7 = arith.constant 7 : index
    %c0_11 = arith.constant 0 : index
    %7 = vector.load %arg5[%c0_10, %c7, %c0_11] : memref<9x16x128xf32, #tpu.memory_space<vmem>>, vector<9x7x128xf32>
    %8 = vector.extract_strided_slice %7 {offsets = [0, 0, 0], sizes = [7, 7, 128], strides = [1, 1, 1]} : vector<9x7x128xf32> to vector<7x7x128xf32>
    %9 = vector.extract_strided_slice %5 {offsets = [0, 0], sizes = [1, 128], strides = [1, 1]} : vector<9x128xf32> to vector<1x128xf32>
    %10 = vector.shape_cast %9 : vector<1x128xf32> to vector<128xf32>
    %11 = vector.shape_cast %10 : vector<128xf32> to vector<1x1x128xf32>
    %12 = vector.broadcast %11 : vector<1x1x128xf32> to vector<7x7x128xf32>
    %13 = arith.mulf %8, %12 : vector<7x7x128xf32>
    %14 = arith.addf %6, %13 : vector<7x7x128xf32>
    %15 = vector.extract_strided_slice %7 {offsets = [1, 0, 0], sizes = [7, 7, 128], strides = [1, 1, 1]} : vector<9x7x128xf32> to vector<7x7x128xf32>
    %16 = vector.extract_strided_slice %5 {offsets = [3, 0], sizes = [1, 128], strides = [1, 1]} : vector<9x128xf32> to vector<1x128xf32>
    %17 = vector.shape_cast %16 : vector<1x128xf32> to vector<128xf32>
    %18 = vector.shape_cast %17 : vector<128xf32> to vector<1x1x128xf32>
    %19 = vector.broadcast %18 : vector<1x1x128xf32> to vector<7x7x128xf32>
    %20 = arith.mulf %15, %19 : vector<7x7x128xf32>
    %21 = arith.addf %14, %20 : vector<7x7x128xf32>
    %22 = vector.extract_strided_slice %7 {offsets = [2, 0, 0], sizes = [7, 7, 128], strides = [1, 1, 1]} : vector<9x7x128xf32> to vector<7x7x128xf32>
    %23 = vector.extract_strided_slice %5 {offsets = [6, 0], sizes = [1, 128], strides = [1, 1]} : vector<9x128xf32> to vector<1x128xf32>
    %24 = vector.shape_cast %23 : vector<1x128xf32> to vector<128xf32>
    %25 = vector.shape_cast %24 : vector<128xf32> to vector<1x1x128xf32>
    %26 = vector.broadcast %25 : vector<1x1x128xf32> to vector<7x7x128xf32>
    %27 = arith.mulf %22, %26 : vector<7x7x128xf32>
    %28 = arith.addf %21, %27 : vector<7x7x128xf32>
    %c0_12 = arith.constant 0 : index
    %c8_13 = arith.constant 8 : index
    %c0_14 = arith.constant 0 : index
    %29 = vector.load %arg5[%c0_12, %c8_13, %c0_14] : memref<9x16x128xf32, #tpu.memory_space<vmem>>, vector<9x7x128xf32>
    %30 = vector.extract_strided_slice %29 {offsets = [0, 0, 0], sizes = [7, 7, 128], strides = [1, 1, 1]} : vector<9x7x128xf32> to vector<7x7x128xf32>
    %31 = vector.extract_strided_slice %5 {offsets = [1, 0], sizes = [1, 128], strides = [1, 1]} : vector<9x128xf32> to vector<1x128xf32>
    %32 = vector.shape_cast %31 : vector<1x128xf32> to vector<128xf32>
    %33 = vector.shape_cast %32 : vector<128xf32> to vector<1x1x128xf32>
    %34 = vector.broadcast %33 : vector<1x1x128xf32> to vector<7x7x128xf32>
    %35 = arith.mulf %30, %34 : vector<7x7x128xf32>
    %36 = arith.addf %28, %35 : vector<7x7x128xf32>
    %37 = vector.extract_strided_slice %29 {offsets = [1, 0, 0], sizes = [7, 7, 128], strides = [1, 1, 1]} : vector<9x7x128xf32> to vector<7x7x128xf32>
    %38 = vector.extract_strided_slice %5 {offsets = [4, 0], sizes = [1, 128], strides = [1, 1]} : vector<9x128xf32> to vector<1x128xf32>
    %39 = vector.shape_cast %38 : vector<1x128xf32> to vector<128xf32>
    %40 = vector.shape_cast %39 : vector<128xf32> to vector<1x1x128xf32>
    %41 = vector.broadcast %40 : vector<1x1x128xf32> to vector<7x7x128xf32>
    %42 = arith.mulf %37, %41 : vector<7x7x128xf32>
    %43 = arith.addf %36, %42 : vector<7x7x128xf32>
    %44 = vector.extract_strided_slice %29 {offsets = [2, 0, 0], sizes = [7, 7, 128], strides = [1, 1, 1]} : vector<9x7x128xf32> to vector<7x7x128xf32>
    %45 = vector.extract_strided_slice %5 {offsets = [7, 0], sizes = [1, 128], strides = [1, 1]} : vector<9x128xf32> to vector<1x128xf32>
    %46 = vector.shape_cast %45 : vector<1x128xf32> to vector<128xf32>
    %47 = vector.shape_cast %46 : vector<128xf32> to vector<1x1x128xf32>
    %48 = vector.broadcast %47 : vector<1x1x128xf32> to vector<7x7x128xf32>
    %49 = arith.mulf %44, %48 : vector<7x7x128xf32>
    %50 = arith.addf %43, %49 : vector<7x7x128xf32>
    %c0_15 = arith.constant 0 : index
    %c9 = arith.constant 9 : index
    %c0_16 = arith.constant 0 : index
    %51 = vector.load %arg5[%c0_15, %c9, %c0_16] : memref<9x16x128xf32, #tpu.memory_space<vmem>>, vector<9x7x128xf32>
    %52 = vector.extract_strided_slice %51 {offsets = [0, 0, 0], sizes = [7, 7, 128], strides = [1, 1, 1]} : vector<9x7x128xf32> to vector<7x7x128xf32>
    %53 = vector.extract_strided_slice %5 {offsets = [2, 0], sizes = [1, 128], strides = [1, 1]} : vector<9x128xf32> to vector<1x128xf32>
    %54 = vector.shape_cast %53 : vector<1x128xf32> to vector<128xf32>
    %55 = vector.shape_cast %54 : vector<128xf32> to vector<1x1x128xf32>
    %56 = vector.broadcast %55 : vector<1x1x128xf32> to vector<7x7x128xf32>
    %57 = arith.mulf %52, %56 : vector<7x7x128xf32>
    %58 = arith.addf %50, %57 : vector<7x7x128xf32>
    %59 = vector.extract_strided_slice %51 {offsets = [1, 0, 0], sizes = [7, 7, 128], strides = [1, 1, 1]} : vector<9x7x128xf32> to vector<7x7x128xf32>
    %60 = vector.extract_strided_slice %5 {offsets = [5, 0], sizes = [1, 128], strides = [1, 1]} : vector<9x128xf32> to vector<1x128xf32>
    %61 = vector.shape_cast %60 : vector<1x128xf32> to vector<128xf32>
    %62 = vector.shape_cast %61 : vector<128xf32> to vector<1x1x128xf32>
    %63 = vector.broadcast %62 : vector<1x1x128xf32> to vector<7x7x128xf32>
    %64 = arith.mulf %59, %63 : vector<7x7x128xf32>
    %65 = arith.addf %58, %64 : vector<7x7x128xf32>
    %66 = vector.extract_strided_slice %51 {offsets = [2, 0, 0], sizes = [7, 7, 128], strides = [1, 1, 1]} : vector<9x7x128xf32> to vector<7x7x128xf32>
    %67 = vector.extract_strided_slice %5 {offsets = [8, 0], sizes = [1, 128], strides = [1, 1]} : vector<9x128xf32> to vector<1x128xf32>
    %68 = vector.shape_cast %67 : vector<1x128xf32> to vector<128xf32>
    %69 = vector.shape_cast %68 : vector<128xf32> to vector<1x1x128xf32>
    %70 = vector.broadcast %69 : vector<1x1x128xf32> to vector<7x7x128xf32>
    %71 = arith.mulf %66, %70 : vector<7x7x128xf32>
    %72 = arith.addf %65, %71 : vector<7x7x128xf32>
    %c0_17 = arith.constant 0 : index
    %c0_18 = arith.constant 0 : index
    %c0_19 = arith.constant 0 : index
    %c0_20 = arith.constant 0 : index
    %73 = vector.load %arg4[%c0_17, %c0_18, %c0_19, %c0_20] : memref<1x7x7x256xf32, #tpu.memory_space<vmem>>, vector<1x7x7x128xf32>
    %74 = vector.shape_cast %73 : vector<1x7x7x128xf32> to vector<7x7x128xf32>
    %75 = vector.shape_cast %72 : vector<7x7x128xf32> to vector<1x7x7x128xf32>
    tpu.vector_store %arg4[%c0_17, %c0_18, %c0_19, %c0_20], %75 {strides = array<i32>} : memref<1x7x7x256xf32, #tpu.memory_space<vmem>>, vector<1x7x7x128xf32>,
    %c0_21 = arith.constant 0 : index
    %c0_22 = arith.constant 0 : index
    %c0_23 = arith.constant 0 : index
    %c128 = arith.constant 128 : index
    %76 = vector.load %arg2[%c0_21, %c0_22, %c0_23, %c128] : memref<1x7x7x256xf32, #tpu.memory_space<vmem>>, vector<1x7x7x128xf32>
    %77 = vector.shape_cast %76 : vector<1x7x7x128xf32> to vector<7x7x128xf32>
    %c1_24 = arith.constant 1 : index
    %c8_25 = arith.constant 8 : index
    %c0_26 = arith.constant 0 : index
    %78 = vector.load %arg5[%c1_24, %c8_25, %c0_26] : memref<9x16x128xf32, #tpu.memory_space<vmem>>, vector<7x7x128xf32>
    tpu.vector_store %arg5[%c1_24, %c8_25, %c0_26], %77 {strides = array<i32>} : memref<9x16x128xf32, #tpu.memory_space<vmem>>, vector<7x7x128xf32>,
    %c0_27 = arith.constant 0 : index
    %c128_28 = arith.constant 128 : index
    %79 = vector.load %arg3[%c0_27, %c128_28] : memref<9x256xf32, #tpu.memory_space<vmem>>, vector<9x128xf32>
    %cst_29 = arith.constant 0.000000e+00 : f32
    %80 = vector.broadcast %cst_29 : f32 to vector<7x7x128xf32>
    %c0_30 = arith.constant 0 : index
    %c7_31 = arith.constant 7 : index
    %c0_32 = arith.constant 0 : index
    %81 = vector.load %arg5[%c0_30, %c7_31, %c0_32] : memref<9x16x128xf32, #tpu.memory_space<vmem>>, vector<9x7x128xf32>
    %82 = vector.extract_strided_slice %81 {offsets = [0, 0, 0], sizes = [7, 7, 128], strides = [1, 1, 1]} : vector<9x7x128xf32> to vector<7x7x128xf32>
    %83 = vector.extract_strided_slice %79 {offsets = [0, 0], sizes = [1, 128], strides = [1, 1]} : vector<9x128xf32> to vector<1x128xf32>
    %84 = vector.shape_cast %83 : vector<1x128xf32> to vector<128xf32>
    %85 = vector.shape_cast %84 : vector<128xf32> to vector<1x1x128xf32>
    %86 = vector.broadcast %85 : vector<1x1x128xf32> to vector<7x7x128xf32>
    %87 = arith.mulf %82, %86 : vector<7x7x128xf32>
    %88 = arith.addf %80, %87 : vector<7x7x128xf32>
    %89 = vector.extract_strided_slice %81 {offsets = [1, 0, 0], sizes = [7, 7, 128], strides = [1, 1, 1]} : vector<9x7x128xf32> to vector<7x7x128xf32>
    %90 = vector.extract_strided_slice %79 {offsets = [3, 0], sizes = [1, 128], strides = [1, 1]} : vector<9x128xf32> to vector<1x128xf32>
    %91 = vector.shape_cast %90 : vector<1x128xf32> to vector<128xf32>
    %92 = vector.shape_cast %91 : vector<128xf32> to vector<1x1x128xf32>
    %93 = vector.broadcast %92 : vector<1x1x128xf32> to vector<7x7x128xf32>
    %94 = arith.mulf %89, %93 : vector<7x7x128xf32>
    %95 = arith.addf %88, %94 : vector<7x7x128xf32>
    %96 = vector.extract_strided_slice %81 {offsets = [2, 0, 0], sizes = [7, 7, 128], strides = [1, 1, 1]} : vector<9x7x128xf32> to vector<7x7x128xf32>
    %97 = vector.extract_strided_slice %79 {offsets = [6, 0], sizes = [1, 128], strides = [1, 1]} : vector<9x128xf32> to vector<1x128xf32>
    %98 = vector.shape_cast %97 : vector<1x128xf32> to vector<128xf32>
    %99 = vector.shape_cast %98 : vector<128xf32> to vector<1x1x128xf32>
    %100 = vector.broadcast %99 : vector<1x1x128xf32> to vector<7x7x128xf32>
    %101 = arith.mulf %96, %100 : vector<7x7x128xf32>
    %102 = arith.addf %95, %101 : vector<7x7x128xf32>
    %c0_33 = arith.constant 0 : index
    %c8_34 = arith.constant 8 : index
    %c0_35 = arith.constant 0 : index
    %103 = vector.load %arg5[%c0_33, %c8_34, %c0_35] : memref<9x16x128xf32, #tpu.memory_space<vmem>>, vector<9x7x128xf32>
    %104 = vector.extract_strided_slice %103 {offsets = [0, 0, 0], sizes = [7, 7, 128], strides = [1, 1, 1]} : vector<9x7x128xf32> to vector<7x7x128xf32>
    %105 = vector.extract_strided_slice %79 {offsets = [1, 0], sizes = [1, 128], strides = [1, 1]} : vector<9x128xf32> to vector<1x128xf32>
    %106 = vector.shape_cast %105 : vector<1x128xf32> to vector<128xf32>
    %107 = vector.shape_cast %106 : vector<128xf32> to vector<1x1x128xf32>
    %108 = vector.broadcast %107 : vector<1x1x128xf32> to vector<7x7x128xf32>
    %109 = arith.mulf %104, %108 : vector<7x7x128xf32>
    %110 = arith.addf %102, %109 : vector<7x7x128xf32>
    %111 = vector.extract_strided_slice %103 {offsets = [1, 0, 0], sizes = [7, 7, 128], strides = [1, 1, 1]} : vector<9x7x128xf32> to vector<7x7x128xf32>
    %112 = vector.extract_strided_slice %79 {offsets = [4, 0], sizes = [1, 128], strides = [1, 1]} : vector<9x128xf32> to vector<1x128xf32>
    %113 = vector.shape_cast %112 : vector<1x128xf32> to vector<128xf32>
    %114 = vector.shape_cast %113 : vector<128xf32> to vector<1x1x128xf32>
    %115 = vector.broadcast %114 : vector<1x1x128xf32> to vector<7x7x128xf32>
    %116 = arith.mulf %111, %115 : vector<7x7x128xf32>
    %117 = arith.addf %110, %116 : vector<7x7x128xf32>
    %118 = vector.extract_strided_slice %103 {offsets = [2, 0, 0], sizes = [7, 7, 128], strides = [1, 1, 1]} : vector<9x7x128xf32> to vector<7x7x128xf32>
    %119 = vector.extract_strided_slice %79 {offsets = [7, 0], sizes = [1, 128], strides = [1, 1]} : vector<9x128xf32> to vector<1x128xf32>
    %120 = vector.shape_cast %119 : vector<1x128xf32> to vector<128xf32>
    %121 = vector.shape_cast %120 : vector<128xf32> to vector<1x1x128xf32>
    %122 = vector.broadcast %121 : vector<1x1x128xf32> to vector<7x7x128xf32>
    %123 = arith.mulf %118, %122 : vector<7x7x128xf32>
    %124 = arith.addf %117, %123 : vector<7x7x128xf32>
    %c0_36 = arith.constant 0 : index
    %c9_37 = arith.constant 9 : index
    %c0_38 = arith.constant 0 : index
    %125 = vector.load %arg5[%c0_36, %c9_37, %c0_38] : memref<9x16x128xf32, #tpu.memory_space<vmem>>, vector<9x7x128xf32>
    %126 = vector.extract_strided_slice %125 {offsets = [0, 0, 0], sizes = [7, 7, 128], strides = [1, 1, 1]} : vector<9x7x128xf32> to vector<7x7x128xf32>
    %127 = vector.extract_strided_slice %79 {offsets = [2, 0], sizes = [1, 128], strides = [1, 1]} : vector<9x128xf32> to vector<1x128xf32>
    %128 = vector.shape_cast %127 : vector<1x128xf32> to vector<128xf32>
    %129 = vector.shape_cast %128 : vector<128xf32> to vector<1x1x128xf32>
    %130 = vector.broadcast %129 : vector<1x1x128xf32> to vector<7x7x128xf32>
    %131 = arith.mulf %126, %130 : vector<7x7x128xf32>
    %132 = arith.addf %124, %131 : vector<7x7x128xf32>
    %133 = vector.extract_strided_slice %125 {offsets = [1, 0, 0], sizes = [7, 7, 128], strides = [1, 1, 1]} : vector<9x7x128xf32> to vector<7x7x128xf32>
    %134 = vector.extract_strided_slice %79 {offsets = [5, 0], sizes = [1, 128], strides = [1, 1]} : vector<9x128xf32> to vector<1x128xf32>
    %135 = vector.shape_cast %134 : vector<1x128xf32> to vector<128xf32>
    %136 = vector.shape_cast %135 : vector<128xf32> to vector<1x1x128xf32>
    %137 = vector.broadcast %136 : vector<1x1x128xf32> to vector<7x7x128xf32>
    %138 = arith.mulf %133, %137 : vector<7x7x128xf32>
    %139 = arith.addf %132, %138 : vector<7x7x128xf32>
    %140 = vector.extract_strided_slice %125 {offsets = [2, 0, 0], sizes = [7, 7, 128], strides = [1, 1, 1]} : vector<9x7x128xf32> to vector<7x7x128xf32>
    %141 = vector.extract_strided_slice %79 {offsets = [8, 0], sizes = [1, 128], strides = [1, 1]} : vector<9x128xf32> to vector<1x128xf32>
    %142 = vector.shape_cast %141 : vector<1x128xf32> to vector<128xf32>
    %143 = vector.shape_cast %142 : vector<128xf32> to vector<1x1x128xf32>
    %144 = vector.broadcast %143 : vector<1x1x128xf32> to vector<7x7x128xf32>
    %145 = arith.mulf %140, %144 : vector<7x7x128xf32>
    %146 = arith.addf %139, %145 : vector<7x7x128xf32>
    %c0_39 = arith.constant 0 : index
    %c0_40 = arith.constant 0 : index
    %c0_41 = arith.constant 0 : index
    %c128_42 = arith.constant 128 : index
    %147 = vector.load %arg4[%c0_39, %c0_40, %c0_41, %c128_42] : memref<1x7x7x256xf32, #tpu.memory_space<vmem>>, vector<1x7x7x128xf32>
    %148 = vector.shape_cast %147 : vector<1x7x7x128xf32> to vector<7x7x128xf32>
    %149 = vector.shape_cast %146 : vector<7x7x128xf32> to vector<1x7x7x128xf32>
    tpu.vector_store %arg4[%c0_39, %c0_40, %c0_41, %c128_42], %149 {strides = array<i32>} : memref<1x7x7x256xf32, #tpu.memory_space<vmem>>, vector<1x7x7x128xf32>,
    return
  }
  func.func @transform_0(%arg0: i32, %arg1: i32) -> (i32, i32, i32, i32) {
    %c0_i32 = arith.constant 0 : i32
    %c0_i32_0 = arith.constant 0 : i32
    %c0_i32_1 = arith.constant 0 : i32
    return %arg0, %c0_i32, %c0_i32_0, %arg1 : i32, i32, i32, i32
  }
  func.func @transform_1(%arg0: i32, %arg1: i32) -> (i32, i32) {
    %c0_i32 = arith.constant 0 : i32
    %c0_i32_0 = arith.constant 0 : i32
    return %c0_i32, %arg1 : i32, i32
  }
  func.func @transform_2(%arg0: i32, %arg1: i32) -> (i32, i32, i32, i32) {
    %c0_i32 = arith.constant 0 : i32
    %c0_i32_0 = arith.constant 0 : i32
    %c0_i32_1 = arith.constant 0 : i32
    return %arg0, %c0_i32, %c0_i32_0, %arg1 : i32, i32, i32, i32
  }
}

</mosaic_0001>

<llo_original>
// kernel: tpu_custom_call.1
$region0: #{tpu_custom_call.1}
  #allocation0 [shape = 'u32[]', space=smem, size = 0x4, offset = 0x4, fixed_abs, tag = 'smem constant byte address 0x4 - core index']
  #allocation1 [shape = 'u32[144,128]{1,0:T(1,128)}', space=vmem, size = 0x12000, scoped, tag = 'internal scratch']
  #allocation2 [shape = 'f32[9,16,128]{2,1,0:T(8,128)}', space=vmem, size = 0x12000, scoped, tag = 'scratch operand']
  %s0 = inlined_call_operand.vmem [shape: f32[1,7,7,512], index: 0, kind: input, shape index: {}]
  %s1 = inlined_call_operand.vmem [shape: f32[9,512], index: 1, kind: input, shape index: {}]
  %s2 = inlined_call_operand.vmem [shape: f32[1,7,7,512], index: 2, kind: output, shape index: {}]
  %s3 = sld [smem:[#allocation0]]
  $region106: #{tpu_custom_call.1} parent=0
    _
  %s5 = ssub.s32 1, %s3
  %s6 = scalar_select 0, %s5, %s3
  $region1: #{tpu_custom_call.1} parent=0
    #allocation3 [shape = 'u8[114688]{0}', space=vmem, size = 0x1c000, scoped, tag = 'input window, operand 0']
    #allocation4 [shape = 'u8[32768]{0}', space=vmem, size = 0x8000, scoped, tag = 'input window, operand 1']
    #allocation5 [shape = 'u8[114688]{0}', space=vmem, size = 0x1c000, scoped, tag = 'output window, operand 0']
    loop: start=0, step=1, limit=4
    $region2: #{tpu_custom_call.1} parent=1 // loop_pre_header
      _
    $region3: #{tpu_custom_call.1} parent=1 // loop_header
      %s8 = sphi 0, %s12
      %p9 = scmp.ge.s32.totalorder %s8, 4
      %s15 = sphi 0, %s27
      %s16 = sphi 0, %s23
      %s17 = sphi 0, %s15
      %s18 = sphi 0, %s16
      %s19 = sphi 0, %s17
      %s20 = sphi 0, %s18
      %s32 = sphi 0, %s34
      %s35 = sphi 0, %s32
      %s36 = sphi 0, %s35
      %s52 = sphi 0, %s36
      %s58 = sphi 0, %s60
      %s61 = sphi 0, %s58
      %s62 = sphi 0, %s61
      %s78 = sphi 0, %s62
      %s86 = sphi 0, %s88
      %s89 = sphi 0, %s86
      %s90 = sphi 0, %s89
      %s106 = sphi 0, %s90
    $region4: #{tpu_custom_call.1} parent=1 // loop_header_branch
      %11 = sbr.rel (%p9) target = $region8
    $region5: #{tpu_custom_call.1} parent=1 // loop_body
      %s13 = ssub.s32 %s8, 1
      %s14 = ssub.s32 %s8, 2
      %s21 = sadd.s32 1, %s16
      %p22 = scmp.ge.s32.totalorder %s21, 2
      %s23 = scalar_select %p22, 0, %s21
      %s24 = sadd.s32 1, %s15
      %s25 = scalar_select %p22, %s24, %s15
      %p26 = scmp.ge.s32.totalorder %s25, 1
      %s27 = scalar_select %p26, 0, %s25
      %s28 = ssub.s32 %s15, %s27
      %s29 = ssub.s32 %s16, %s23
      %s30 = sor.u32 %s28, %s29
      %p31 = scmp.eq.s32.totalorder %s30, 0
      %s33 = sadd.s32 %s32, 1
      %s34 = scalar_select %p31, %s32, %s33
      %p37 = pneg %p31
      %p38 = scmp.eq.s32.totalorder %s8, 1
      %p39 = por %p37, %p38
      %p40 = scmp.ne.s32.totalorder %s32, %s35
      %p41 = scmp.eq.s32.totalorder %s8, 0
      %p42 = por %p40, %p41
      %p43 = scmp.ne.s32.totalorder %s32, %s35
      %p44 = scmp.eq.s32.totalorder %s13, 1
      %p45 = por %p43, %p44
      %p46 = scmp.ne.s32.totalorder %s35, %s36
      %p47 = scmp.eq.s32.totalorder %s13, 0
      %p48 = por %p46, %p47
      %p49 = scmp.ne.s32.totalorder %s35, %s36
      %p50 = scmp.eq.s32.totalorder %s14, 1
      %p51 = por %p49, %p50
      %p53 = scmp.ne.s32.totalorder %s36, %s52
      %p54 = scmp.eq.s32.totalorder %s14, 0
      %p55 = por %p53, %p54
      %s56 = ssub.s32 %s16, %s23
      %p57 = scmp.eq.s32.totalorder %s56, 0
      %s59 = sadd.s32 %s58, 1
      %s60 = scalar_select %p57, %s58, %s59
      %p63 = pneg %p57
      %p64 = scmp.eq.s32.totalorder %s8, 1
      %p65 = por %p63, %p64
      %p66 = scmp.ne.s32.totalorder %s58, %s61
      %p67 = scmp.eq.s32.totalorder %s8, 0
      %p68 = por %p66, %p67
      %p69 = scmp.ne.s32.totalorder %s58, %s61
      %p70 = scmp.eq.s32.totalorder %s13, 1
      %p71 = por %p69, %p70
      %p72 = scmp.ne.s32.totalorder %s61, %s62
      %p73 = scmp.eq.s32.totalorder %s13, 0
      %p74 = por %p72, %p73
      %p75 = scmp.ne.s32.totalorder %s61, %s62
      %p76 = scmp.eq.s32.totalorder %s14, 1
      %p77 = por %p75, %p76
      %p79 = scmp.ne.s32.totalorder %s62, %s78
      %p80 = scmp.eq.s32.totalorder %s14, 0
      %p81 = por %p79, %p80
      %s82 = ssub.s32 %s15, %s27
      %s83 = ssub.s32 %s16, %s23
      %s84 = sor.u32 %s82, %s83
      %p85 = scmp.eq.s32.totalorder %s84, 0
      %s87 = sadd.s32 %s86, 1
      %s88 = scalar_select %p85, %s86, %s87
      %p91 = pneg %p85
      %p92 = scmp.eq.s32.totalorder %s8, 1
      %p93 = por %p91, %p92
      %p94 = scmp.ne.s32.totalorder %s86, %s89
      %p95 = scmp.eq.s32.totalorder %s8, 0
      %p96 = por %p94, %p95
      %p97 = scmp.ne.s32.totalorder %s86, %s89
      %p98 = scmp.eq.s32.totalorder %s13, 1
      %p99 = por %p97, %p98
      %p100 = scmp.ne.s32.totalorder %s89, %s90
      %p101 = scmp.eq.s32.totalorder %s13, 0
      %p102 = por %p100, %p101
      %p103 = scmp.ne.s32.totalorder %s89, %s90
      %p104 = scmp.eq.s32.totalorder %s14, 1
      %p105 = por %p103, %p104
      %p107 = scmp.ne.s32.totalorder %s90, %s106
      %p108 = scmp.eq.s32.totalorder %s14, 0
      %p109 = por %p107, %p108
      %p110 = scmp.le.s32.totalorder 1, %s8
      %p111 = scmp.lt.s32.totalorder %s8, 3
      %p112 = pnand %p110, %p111
      %p113 = pneg %p112
      // Predicated region
      $region9: #{tpu_custom_call.1} parent=5 // pred_check
        _
      $region10: #{tpu_custom_call.1} parent=5 // pred_check_branch
        %115 = sbr.rel (%p112) target = $region12
      $region11: #{tpu_custom_call.1} parent=5 // pred_region
        %s116 = ssub.s32 %s8, 1
      $region12: #{tpu_custom_call.1} parent=5 // pred_fallthru
        _
      %p117 = scmp.lt.s32.totalorder %s8, 2
      // Predicated region
      $region13: #{tpu_custom_call.1} parent=5 // pred_check
        %p118 = pneg %p117
      $region14: #{tpu_custom_call.1} parent=5 // pred_check_branch
        %120 = sbr.rel (%p118) target = $region16
      $region15: #{tpu_custom_call.1} parent=5 // pred_region
        // Predicated region
        $region17: #{tpu_custom_call.1} parent=15 // pred_check
          %p121 = pneg %p42
        $region18: #{tpu_custom_call.1} parent=15 // pred_check_branch
          %123 = sbr.rel (%p121) target = $region20
        $region19: #{tpu_custom_call.1} parent=15 // pred_region
          %s124 = sand.u32 %s32, 1
          %s125 = sand.u32 %s32, 1
          %s126 = smul.addr %s125, 112
          %s127 = scalar_lea.vmem [#allocation3], %s126
          %s128 = smul.u32 2, %s16
          %s129 = smul.addr %s15, 28
          %s130 = sadd.s32 %s128, %s129
          %s131 = smul.addr %s130, 8
          %s132 = scalar_lea.vmem %s0, %s131
          // Predicated region
          $region21: #{tpu_custom_call.1} parent=19 // pred_check
            _
          $region22: #{tpu_custom_call.1} parent=19 // pred_check_branch
            %134 = sbr.rel (0) target = $region24
          $region23: #{tpu_custom_call.1} parent=19 // pred_region
            // Predicated region
            $region25: #{tpu_custom_call.1} parent=23 // pred_check
              _
            $region26: #{tpu_custom_call.1} parent=23 // pred_check_branch
              %136 = sbr.rel (0) target = $region28
            $region27: #{tpu_custom_call.1} parent=23 // pred_region
              loop: start=0, step=1, limit=1
              $region29: #{tpu_custom_call.1} parent=27 // loop_pre_header
                _
              $region30: #{tpu_custom_call.1} parent=27 // loop_header
                %s138 = sphi 0, %s142
                %p139 = scmp.ge.s32.totalorder %s138, 1
                %s143 = sphi %s132, %s132
                %s144 = sphi %s127, %s127
              $region31: #{tpu_custom_call.1} parent=27 // loop_header_branch
                %141 = sbr.rel (%p139) target = $region35
              $region32: #{tpu_custom_call.1} parent=27 // loop_body
                %v145 = vld [vmem:[%s143] sm:$0xff]
                %146 = vst [vmem:[%s144] sm:$0xff] %v145
                %v147 = vld [vmem:[%s143 + $0x8] sm:$0xff]
                %148 = vst [vmem:[%s144 + $0x8] sm:$0xff] %v147
                %v149 = vld [vmem:[%s143 + $0x20] sm:$0xff]
                %150 = vst [vmem:[%s144 + $0x10] sm:$0xff] %v149
                %v151 = vld [vmem:[%s143 + $0x28] sm:$0xff]
                %152 = vst [vmem:[%s144 + $0x18] sm:$0xff] %v151
                %v153 = vld [vmem:[%s143 + $0x40] sm:$0xff]
                %154 = vst [vmem:[%s144 + $0x20] sm:$0xff] %v153
                %v155 = vld [vmem:[%s143 + $0x48] sm:$0xff]
                %156 = vst [vmem:[%s144 + $0x28] sm:$0xff] %v155
                %v157 = vld [vmem:[%s143 + $0x60] sm:$0xff]
                %158 = vst [vmem:[%s144 + $0x30] sm:$0xff] %v157
                %v159 = vld [vmem:[%s143 + $0x68] sm:$0xff]
                %160 = vst [vmem:[%s144 + $0x38] sm:$0xff] %v159
                %v161 = vld [vmem:[%s143 + $0x80] sm:$0xff]
                %162 = vst [vmem:[%s144 + $0x40] sm:$0xff] %v161
                %v163 = vld [vmem:[%s143 + $0x88] sm:$0xff]
                %164 = vst [vmem:[%s144 + $0x48] sm:$0xff] %v163
                %v165 = vld [vmem:[%s143 + $0xa0] sm:$0xff]
                %166 = vst [vmem:[%s144 + $0x50] sm:$0xff] %v165
                %v167 = vld [vmem:[%s143 + $0xa8] sm:$0xff]
                %168 = vst [vmem:[%s144 + $0x58] sm:$0xff] %v167
                %v169 = vld [vmem:[%s143 + $0xc0] sm:$0xff]
                %170 = vst [vmem:[%s144 + $0x60] sm:$0xff] %v169
                %v171 = vld [vmem:[%s143 + $0xc8] sm:$0xff]
                %172 = vst [vmem:[%s144 + $0x68] sm:$0xff] %v171
              $region33: #{tpu_custom_call.1} parent=27 // loop_footer
                %s142 = sadd.s32 1, %s138
              $region34: #{tpu_custom_call.1} parent=27 // loop_footer_branch
                %137 = sbr.rel target = $region30
              $region35: #{tpu_custom_call.1} parent=27 // loop_exit
                _
            $region28: #{tpu_custom_call.1} parent=23 // pred_fallthru
              _
            // Predicated region
            $region36: #{tpu_custom_call.1} parent=23 // pred_check
              _
            $region37: #{tpu_custom_call.1} parent=23 // pred_check_branch
              %174 = sbr.rel target = $region39
            $region38: #{tpu_custom_call.1} parent=23 // pred_region
              _
            $region39: #{tpu_custom_call.1} parent=23 // pred_fallthru
              _
          $region24: #{tpu_custom_call.1} parent=19 // pred_fallthru
            _
          %175 = vnop
        $region20: #{tpu_custom_call.1} parent=15 // pred_fallthru
          _
        // Predicated region
        $region40: #{tpu_custom_call.1} parent=15 // pred_check
          %p176 = pneg %p68
        $region41: #{tpu_custom_call.1} parent=15 // pred_check_branch
          %178 = sbr.rel (%p176) target = $region43
        $region42: #{tpu_custom_call.1} parent=15 // pred_region
          %s179 = sand.u32 %s58, 1
          %s180 = sand.u32 %s58, 1
          %s181 = smul.addr %s180, 32
          %s182 = scalar_lea.vmem [#allocation4], %s181
          %s183 = smul.u32 2, %s16
          %s184 = smul.addr %s183, 8
          %s185 = scalar_lea.vmem %s1, %s184
          // Predicated region
          $region44: #{tpu_custom_call.1} parent=42 // pred_check
            _
          $region45: #{tpu_custom_call.1} parent=42 // pred_check_branch
            %187 = sbr.rel (0) target = $region47
          $region46: #{tpu_custom_call.1} parent=42 // pred_region
            // Predicated region
            $region48: #{tpu_custom_call.1} parent=46 // pred_check
              _
            $region49: #{tpu_custom_call.1} parent=46 // pred_check_branch
              %189 = sbr.rel (0) target = $region51
            $region50: #{tpu_custom_call.1} parent=46 // pred_region
              loop: start=0, step=1, limit=1
              $region52: #{tpu_custom_call.1} parent=50 // loop_pre_header
                _
              $region53: #{tpu_custom_call.1} parent=50 // loop_header
                %s191 = sphi 0, %s195
                %p192 = scmp.ge.s32.totalorder %s191, 1
                %s196 = sphi %s185, %s185
                %s197 = sphi %s182, %s182
              $region54: #{tpu_custom_call.1} parent=50 // loop_header_branch
                %194 = sbr.rel (%p192) target = $region58
              $region55: #{tpu_custom_call.1} parent=50 // loop_body
                %v198 = vld [vmem:[%s196] sm:$0xff]
                %199 = vst [vmem:[%s197] sm:$0xff] %v198
                %v200 = vld [vmem:[%s196 + $0x8] sm:$0xff]
                %201 = vst [vmem:[%s197 + $0x8] sm:$0xff] %v200
                %v202 = vld [vmem:[%s196 + $0x20] sm:$0xff]
                %203 = vst [vmem:[%s197 + $0x10] sm:$0xff] %v202
                %v204 = vld [vmem:[%s196 + $0x28] sm:$0xff]
                %205 = vst [vmem:[%s197 + $0x18] sm:$0xff] %v204
              $region56: #{tpu_custom_call.1} parent=50 // loop_footer
                %s195 = sadd.s32 1, %s191
              $region57: #{tpu_custom_call.1} parent=50 // loop_footer_branch
                %190 = sbr.rel target = $region53
              $region58: #{tpu_custom_call.1} parent=50 // loop_exit
                _
            $region51: #{tpu_custom_call.1} parent=46 // pred_fallthru
              _
            // Predicated region
            $region59: #{tpu_custom_call.1} parent=46 // pred_check
              _
            $region60: #{tpu_custom_call.1} parent=46 // pred_check_branch
              %207 = sbr.rel target = $region62
            $region61: #{tpu_custom_call.1} parent=46 // pred_region
              _
            $region62: #{tpu_custom_call.1} parent=46 // pred_fallthru
              _
          $region47: #{tpu_custom_call.1} parent=42 // pred_fallthru
            _
          %208 = vnop
        $region43: #{tpu_custom_call.1} parent=15 // pred_fallthru
          _
      $region16: #{tpu_custom_call.1} parent=5 // pred_fallthru
        _
      %p209 = scmp.le.s32.totalorder 1, %s8
      %p210 = scmp.lt.s32.totalorder %s8, 3
      %p211 = pnand %p209, %p210
      %p212 = pneg %p211
      // Predicated region
      $region63: #{tpu_custom_call.1} parent=5 // pred_check
        _
      $region64: #{tpu_custom_call.1} parent=5 // pred_check_branch
        %214 = sbr.rel (%p211) target = $region66
      $region65: #{tpu_custom_call.1} parent=5 // pred_region
        %s215 = ssub.s32 %s8, 1
        %s216 = sand.u32 %s35, 1
        %s217 = sand.u32 %s35, 1
        %s218 = smul.addr %s217, 112
        %s219 = scalar_lea.vmem [#allocation3], %s218
        // Predicated region
        $region67: #{tpu_custom_call.1} parent=65 // pred_check
          %p220 = pneg %p48
        $region68: #{tpu_custom_call.1} parent=65 // pred_check_branch
          %222 = sbr.rel (%p220) target = $region70
        $region69: #{tpu_custom_call.1} parent=65 // pred_region
          _
        $region70: #{tpu_custom_call.1} parent=65 // pred_fallthru
          _
        %s223 = sand.u32 %s61, 1
        %s224 = sand.u32 %s61, 1
        %s225 = smul.addr %s224, 32
        %s226 = scalar_lea.vmem [#allocation4], %s225
        // Predicated region
        $region71: #{tpu_custom_call.1} parent=65 // pred_check
          %p227 = pneg %p74
        $region72: #{tpu_custom_call.1} parent=65 // pred_check_branch
          %229 = sbr.rel (%p227) target = $region74
        $region73: #{tpu_custom_call.1} parent=65 // pred_region
          _
        $region74: #{tpu_custom_call.1} parent=65 // pred_fallthru
          _
        %s230 = sand.u32 %s35, 1
        %s231 = sand.u32 %s35, 1
        %s232 = smul.addr %s231, 112
        %s233 = scalar_lea.vmem [#allocation3], %s232
        %p234 = pneg %p48
        %p235 = pneg %p45
        %s236 = sand.u32 %s61, 1
        %s237 = sand.u32 %s61, 1
        %s238 = smul.addr %s237, 32
        %s239 = scalar_lea.vmem [#allocation4], %s238
        %p240 = pneg %p74
        %p241 = pneg %p71
        %p242 = pneg %p102
        %p243 = pneg %p99
        %s244 = sand.u32 %s89, 1
        %s245 = sand.u32 %s89, 1
        %s246 = smul.addr %s245, 112
        %s247 = scalar_lea.vmem [#allocation5], %s246
        %s248 = smul.u32 2, %s18
        %s249 = smul.u32 2, %s18
        %s250 = smul.u32 2, %s18
        %251 = vst [vmem:[#allocation2] sm:$0xff] 0.0
        %252 = vst [vmem:[#allocation2 + $0x8] sm:$0xff] 0.0
        %253 = vst [vmem:[#allocation2 + $0x10] sm:$0xff] 0.0
        %254 = vst [vmem:[#allocation2 + $0x18] sm:$0xff] 0.0
        %255 = vst [vmem:[#allocation2 + $0x20] sm:$0xff] 0.0
        %256 = vst [vmem:[#allocation2 + $0x28] sm:$0xff] 0.0
        %257 = vst [vmem:[#allocation2 + $0x30] sm:$0xff] 0.0
        %258 = vst [vmem:[#allocation2 + $0x38] sm:$0xff] 0.0
        %259 = vst [vmem:[#allocation2 + $0x40] sm:$0xff] 0.0
        %260 = vst [vmem:[#allocation2 + $0x48] sm:$0xff] 0.0
        %261 = vst [vmem:[#allocation2 + $0x50] sm:$0xff] 0.0
        %262 = vst [vmem:[#allocation2 + $0x58] sm:$0xff] 0.0
        %263 = vst [vmem:[#allocation2 + $0x60] sm:$0xff] 0.0
        %264 = vst [vmem:[#allocation2 + $0x68] sm:$0xff] 0.0
        %265 = vst [vmem:[#allocation2 + $0x70] sm:$0xff] 0.0
        %266 = vst [vmem:[#allocation2 + $0x78] sm:$0xff] 0.0
        %267 = vst [vmem:[#allocation2 + $0x80] sm:$0xff] 0.0
        %268 = vst [vmem:[#allocation2 + $0x88] sm:$0xff] 0.0
        %v269 = vld [vmem:[%s219] sm:$0x7f]
        %v270 = vld [vmem:[%s219 + $0x10] sm:$0x7f]
        %v271 = vld [vmem:[%s219 + $0x20] sm:$0x7f]
        %v272 = vld [vmem:[%s219 + $0x30] sm:$0x7f]
        %v273 = vld [vmem:[%s219 + $0x40] sm:$0x7f]
        %v274 = vld [vmem:[%s219 + $0x50] sm:$0x7f]
        %v275 = vld [vmem:[%s219 + $0x60] sm:$0x7f]
        %s276 = scalar_lea.vmem [#allocation2], 16
        %277 = vst [vmem:[%s276 + $0x8] sm:$0x7f] %v269
        %278 = vst [vmem:[%s276 + $0x18] sm:$0x7f] %v270
        %279 = vst [vmem:[%s276 + $0x28] sm:$0x7f] %v271
        %280 = vst [vmem:[%s276 + $0x38] sm:$0x7f] %v272
        %281 = vst [vmem:[%s276 + $0x48] sm:$0x7f] %v273
        %282 = vst [vmem:[%s276 + $0x58] sm:$0x7f] %v274
        %283 = vst [vmem:[%s276 + $0x68] sm:$0x7f] %v275
        %v284 = vld [vmem:[%s226] sm:$0xff]
        %v285 = vld [vmem:[%s226 + $0x10] sm:$0x1]
        %v286 = vld [vmem:[#allocation2 + $0x7] sm:$0x7f]
        %v287 = vld [vmem:[#allocation2 + $0x17] sm:$0x7f]
        %v288 = vld [vmem:[#allocation2 + $0x27] sm:$0x7f]
        %v289 = vld [vmem:[#allocation2 + $0x37] sm:$0x7f]
        %v290 = vld [vmem:[#allocation2 + $0x47] sm:$0x7f]
        %v291 = vld [vmem:[#allocation2 + $0x57] sm:$0x7f]
        %v292 = vld [vmem:[#allocation2 + $0x67] sm:$0x7f]
        %v293 = vld [vmem:[#allocation2 + $0x77] sm:$0x7f]
        %v294 = vld [vmem:[#allocation2 + $0x87] sm:$0x7f]
        %v295 = vlaneseq
        %v296 = vshrl.u32 %v295, 7
        %v297 = vsub.s32 0, %v296
        %v298 = vrot.slane %v284, %v297
        %v299 = vmul.f32 %v286, %v298
        %v300 = vmul.f32 %v287, %v298
        %v301 = vmul.f32 %v288, %v298
        %v302 = vmul.f32 %v289, %v298
        %v303 = vmul.f32 %v290, %v298
        %v304 = vmul.f32 %v291, %v298
        %v305 = vmul.f32 %v292, %v298
        %v306 = vadd.f32 %v299, 0.0
        %v307 = vadd.f32 %v300, 0.0
        %v308 = vadd.f32 %v301, 0.0
        %v309 = vadd.f32 %v302, 0.0
        %v310 = vadd.f32 %v303, 0.0
        %v311 = vadd.f32 %v304, 0.0
        %v312 = vadd.f32 %v305, 0.0
        %v313 = vlaneseq
        %v314 = vshrl.u32 %v313, 7
        %v315 = vsub.s32 3, %v314
        %v316 = vrot.slane %v284, %v315
        %v317 = vmul.f32 %v287, %v316
        %v318 = vmul.f32 %v288, %v316
        %v319 = vmul.f32 %v289, %v316
        %v320 = vmul.f32 %v290, %v316
        %v321 = vmul.f32 %v291, %v316
        %v322 = vmul.f32 %v292, %v316
        %v323 = vmul.f32 %v293, %v316
        %v324 = vadd.f32 %v306, %v317
        %v325 = vadd.f32 %v307, %v318
        %v326 = vadd.f32 %v308, %v319
        %v327 = vadd.f32 %v309, %v320
        %v328 = vadd.f32 %v310, %v321
        %v329 = vadd.f32 %v311, %v322
        %v330 = vadd.f32 %v312, %v323
        %v331 = vlaneseq
        %v332 = vshrl.u32 %v331, 7
        %v333 = vsub.s32 6, %v332
        %v334 = vrot.slane %v284, %v333
        %v335 = vmul.f32 %v288, %v334
        %v336 = vmul.f32 %v289, %v334
        %v337 = vmul.f32 %v290, %v334
        %v338 = vmul.f32 %v291, %v334
        %v339 = vmul.f32 %v292, %v334
        %v340 = vmul.f32 %v293, %v334
        %v341 = vmul.f32 %v294, %v334
        %v342 = vadd.f32 %v324, %v335
        %v343 = vadd.f32 %v325, %v336
        %v344 = vadd.f32 %v326, %v337
        %v345 = vadd.f32 %v327, %v338
        %v346 = vadd.f32 %v328, %v339
        %v347 = vadd.f32 %v329, %v340
        %v348 = vadd.f32 %v330, %v341
        %v349 = vld [vmem:[#allocation2 + $0x8] sm:$0x7f]
        %v350 = vld [vmem:[#allocation2 + $0x18] sm:$0x7f]
        %v351 = vld [vmem:[#allocation2 + $0x28] sm:$0x7f]
        %v352 = vld [vmem:[#allocation2 + $0x38] sm:$0x7f]
        %v353 = vld [vmem:[#allocation2 + $0x48] sm:$0x7f]
        %v354 = vld [vmem:[#allocation2 + $0x58] sm:$0x7f]
        %v355 = vld [vmem:[#allocation2 + $0x68] sm:$0x7f]
        %v356 = vld [vmem:[#allocation2 + $0x78] sm:$0x7f]
        %v357 = vld [vmem:[#allocation2 + $0x88] sm:$0x7f]
        %v358 = vlaneseq
        %v359 = vshrl.u32 %v358, 7
        %v360 = vsub.s32 1, %v359
        %v361 = vrot.slane %v284, %v360
        %v362 = vmul.f32 %v349, %v361
        %v363 = vmul.f32 %v350, %v361
        %v364 = vmul.f32 %v351, %v361
        %v365 = vmul.f32 %v352, %v361
        %v366 = vmul.f32 %v353, %v361
        %v367 = vmul.f32 %v354, %v361
        %v368 = vmul.f32 %v355, %v361
        %v369 = vadd.f32 %v342, %v362
        %v370 = vadd.f32 %v343, %v363
        %v371 = vadd.f32 %v344, %v364
        %v372 = vadd.f32 %v345, %v365
        %v373 = vadd.f32 %v346, %v366
        %v374 = vadd.f32 %v347, %v367
        %v375 = vadd.f32 %v348, %v368
        %v376 = vlaneseq
        %v377 = vshrl.u32 %v376, 7
        %v378 = vsub.s32 4, %v377
        %v379 = vrot.slane %v284, %v378
        %v380 = vmul.f32 %v350, %v379
        %v381 = vmul.f32 %v351, %v379
        %v382 = vmul.f32 %v352, %v379
        %v383 = vmul.f32 %v353, %v379
        %v384 = vmul.f32 %v354, %v379
        %v385 = vmul.f32 %v355, %v379
        %v386 = vmul.f32 %v356, %v379
        %v387 = vadd.f32 %v369, %v380
        %v388 = vadd.f32 %v370, %v381
        %v389 = vadd.f32 %v371, %v382
        %v390 = vadd.f32 %v372, %v383
        %v391 = vadd.f32 %v373, %v384
        %v392 = vadd.f32 %v374, %v385
        %v393 = vadd.f32 %v375, %v386
        %v394 = vlaneseq
        %v395 = vshrl.u32 %v394, 7
        %v396 = vsub.s32 7, %v395
        %v397 = vrot.slane %v284, %v396
        %v398 = vmul.f32 %v351, %v397
        %v399 = vmul.f32 %v352, %v397
        %v400 = vmul.f32 %v353, %v397
        %v401 = vmul.f32 %v354, %v397
        %v402 = vmul.f32 %v355, %v397
        %v403 = vmul.f32 %v356, %v397
        %v404 = vmul.f32 %v357, %v397
        %v405 = vadd.f32 %v387, %v398
        %v406 = vadd.f32 %v388, %v399
        %v407 = vadd.f32 %v389, %v400
        %v408 = vadd.f32 %v390, %v401
        %v409 = vadd.f32 %v391, %v402
        %v410 = vadd.f32 %v392, %v403
        %v411 = vadd.f32 %v393, %v404
        %v412 = vld [vmem:[#allocation2 + $0x9] sm:$0x7f]
        %v413 = vld [vmem:[#allocation2 + $0x19] sm:$0x7f]
        %v414 = vld [vmem:[#allocation2 + $0x29] sm:$0x7f]
        %v415 = vld [vmem:[#allocation2 + $0x39] sm:$0x7f]
        %v416 = vld [vmem:[#allocation2 + $0x49] sm:$0x7f]
        %v417 = vld [vmem:[#allocation2 + $0x59] sm:$0x7f]
        %v418 = vld [vmem:[#allocation2 + $0x69] sm:$0x7f]
        %v419 = vld [vmem:[#allocation2 + $0x79] sm:$0x7f]
        %v420 = vld [vmem:[#allocation2 + $0x89] sm:$0x7f]
        %v421 = vlaneseq
        %v422 = vshrl.u32 %v421, 7
        %v423 = vsub.s32 2, %v422
        %v424 = vrot.slane %v284, %v423
        %v425 = vmul.f32 %v412, %v424
        %v426 = vmul.f32 %v413, %v424
        %v427 = vmul.f32 %v414, %v424
        %v428 = vmul.f32 %v415, %v424
        %v429 = vmul.f32 %v416, %v424
        %v430 = vmul.f32 %v417, %v424
        %v431 = vmul.f32 %v418, %v424
        %v432 = vadd.f32 %v405, %v425
        %v433 = vadd.f32 %v406, %v426
        %v434 = vadd.f32 %v407, %v427
        %v435 = vadd.f32 %v408, %v428
        %v436 = vadd.f32 %v409, %v429
        %v437 = vadd.f32 %v410, %v430
        %v438 = vadd.f32 %v411, %v431
        %v439 = vlaneseq
        %v440 = vshrl.u32 %v439, 7
        %v441 = vsub.s32 5, %v440
        %v442 = vrot.slane %v284, %v441
        %v443 = vmul.f32 %v413, %v442
        %v444 = vmul.f32 %v414, %v442
        %v445 = vmul.f32 %v415, %v442
        %v446 = vmul.f32 %v416, %v442
        %v447 = vmul.f32 %v417, %v442
        %v448 = vmul.f32 %v418, %v442
        %v449 = vmul.f32 %v419, %v442
        %v450 = vadd.f32 %v432, %v443
        %v451 = vadd.f32 %v433, %v444
        %v452 = vadd.f32 %v434, %v445
        %v453 = vadd.f32 %v435, %v446
        %v454 = vadd.f32 %v436, %v447
        %v455 = vadd.f32 %v437, %v448
        %v456 = vadd.f32 %v438, %v449
        %v457 = vlaneseq
        %v458 = vshrl.u32 %v457, 7
        %v459 = vsub.s32 0, %v458
        %v460 = vrot.slane %v285, %v459
        %v461 = vmul.f32 %v414, %v460
        %v462 = vmul.f32 %v415, %v460
        %v463 = vmul.f32 %v416, %v460
        %v464 = vmul.f32 %v417, %v460
        %v465 = vmul.f32 %v418, %v460
        %v466 = vmul.f32 %v419, %v460
        %v467 = vmul.f32 %v420, %v460
        %v468 = vadd.f32 %v450, %v461
        %v469 = vadd.f32 %v451, %v462
        %v470 = vadd.f32 %v452, %v463
        %v471 = vadd.f32 %v453, %v464
        %v472 = vadd.f32 %v454, %v465
        %v473 = vadd.f32 %v455, %v466
        %v474 = vadd.f32 %v456, %v467
        %475 = vst [vmem:[%s247] sm:$0x7f] %v468
        %476 = vst [vmem:[%s247 + $0x10] sm:$0x7f] %v469
        %477 = vst [vmem:[%s247 + $0x20] sm:$0x7f] %v470
        %478 = vst [vmem:[%s247 + $0x30] sm:$0x7f] %v471
        %479 = vst [vmem:[%s247 + $0x40] sm:$0x7f] %v472
        %480 = vst [vmem:[%s247 + $0x50] sm:$0x7f] %v473
        %481 = vst [vmem:[%s247 + $0x60] sm:$0x7f] %v474
        %v482 = vld [vmem:[%s219 + $0x8] sm:$0x7f]
        %v483 = vld [vmem:[%s219 + $0x18] sm:$0x7f]
        %v484 = vld [vmem:[%s219 + $0x28] sm:$0x7f]
        %v485 = vld [vmem:[%s219 + $0x38] sm:$0x7f]
        %v486 = vld [vmem:[%s219 + $0x48] sm:$0x7f]
        %v487 = vld [vmem:[%s219 + $0x58] sm:$0x7f]
        %v488 = vld [vmem:[%s219 + $0x68] sm:$0x7f]
        %489 = vst [vmem:[%s276 + $0x8] sm:$0x7f] %v482
        %490 = vst [vmem:[%s276 + $0x18] sm:$0x7f] %v483
        %491 = vst [vmem:[%s276 + $0x28] sm:$0x7f] %v484
        %492 = vst [vmem:[%s276 + $0x38] sm:$0x7f] %v485
        %493 = vst [vmem:[%s276 + $0x48] sm:$0x7f] %v486
        %494 = vst [vmem:[%s276 + $0x58] sm:$0x7f] %v487
        %495 = vst [vmem:[%s276 + $0x68] sm:$0x7f] %v488
        %v496 = vld [vmem:[%s226 + $0x8] sm:$0xff]
        %v497 = vld [vmem:[%s226 + $0x18] sm:$0x1]
        %v498 = vld [vmem:[#allocation2 + $0x7] sm:$0x7f]
        %v499 = vld [vmem:[#allocation2 + $0x17] sm:$0x7f]
        %v500 = vld [vmem:[#allocation2 + $0x27] sm:$0x7f]
        %v501 = vld [vmem:[#allocation2 + $0x37] sm:$0x7f]
        %v502 = vld [vmem:[#allocation2 + $0x47] sm:$0x7f]
        %v503 = vld [vmem:[#allocation2 + $0x57] sm:$0x7f]
        %v504 = vld [vmem:[#allocation2 + $0x67] sm:$0x7f]
        %v505 = vld [vmem:[#allocation2 + $0x77] sm:$0x7f]
        %v506 = vld [vmem:[#allocation2 + $0x87] sm:$0x7f]
        %v507 = vlaneseq
        %v508 = vshrl.u32 %v507, 7
        %v509 = vsub.s32 0, %v508
        %v510 = vrot.slane %v496, %v509
        %v511 = vmul.f32 %v498, %v510
        %v512 = vmul.f32 %v499, %v510
        %v513 = vmul.f32 %v500, %v510
        %v514 = vmul.f32 %v501, %v510
        %v515 = vmul.f32 %v502, %v510
        %v516 = vmul.f32 %v503, %v510
        %v517 = vmul.f32 %v504, %v510
        %v518 = vadd.f32 %v511, 0.0
        %v519 = vadd.f32 %v512, 0.0
        %v520 = vadd.f32 %v513, 0.0
        %v521 = vadd.f32 %v514, 0.0
        %v522 = vadd.f32 %v515, 0.0
        %v523 = vadd.f32 %v516, 0.0
        %v524 = vadd.f32 %v517, 0.0
        %v525 = vlaneseq
        %v526 = vshrl.u32 %v525, 7
        %v527 = vsub.s32 3, %v526
        %v528 = vrot.slane %v496, %v527
        %v529 = vmul.f32 %v499, %v528
        %v530 = vmul.f32 %v500, %v528
        %v531 = vmul.f32 %v501, %v528
        %v532 = vmul.f32 %v502, %v528
        %v533 = vmul.f32 %v503, %v528
        %v534 = vmul.f32 %v504, %v528
        %v535 = vmul.f32 %v505, %v528
        %v536 = vadd.f32 %v518, %v529
        %v537 = vadd.f32 %v519, %v530
        %v538 = vadd.f32 %v520, %v531
        %v539 = vadd.f32 %v521, %v532
        %v540 = vadd.f32 %v522, %v533
        %v541 = vadd.f32 %v523, %v534
        %v542 = vadd.f32 %v524, %v535
        %v543 = vlaneseq
        %v544 = vshrl.u32 %v543, 7
        %v545 = vsub.s32 6, %v544
        %v546 = vrot.slane %v496, %v545
        %v547 = vmul.f32 %v500, %v546
        %v548 = vmul.f32 %v501, %v546
        %v549 = vmul.f32 %v502, %v546
        %v550 = vmul.f32 %v503, %v546
        %v551 = vmul.f32 %v504, %v546
        %v552 = vmul.f32 %v505, %v546
        %v553 = vmul.f32 %v506, %v546
        %v554 = vadd.f32 %v536, %v547
        %v555 = vadd.f32 %v537, %v548
        %v556 = vadd.f32 %v538, %v549
        %v557 = vadd.f32 %v539, %v550
        %v558 = vadd.f32 %v540, %v551
        %v559 = vadd.f32 %v541, %v552
        %v560 = vadd.f32 %v542, %v553
        %v561 = vld [vmem:[#allocation2 + $0x8] sm:$0x7f]
        %v562 = vld [vmem:[#allocation2 + $0x18] sm:$0x7f]
        %v563 = vld [vmem:[#allocation2 + $0x28] sm:$0x7f]
        %v564 = vld [vmem:[#allocation2 + $0x38] sm:$0x7f]
        %v565 = vld [vmem:[#allocation2 + $0x48] sm:$0x7f]
        %v566 = vld [vmem:[#allocation2 + $0x58] sm:$0x7f]
        %v567 = vld [vmem:[#allocation2 + $0x68] sm:$0x7f]
        %v568 = vld [vmem:[#allocation2 + $0x78] sm:$0x7f]
        %v569 = vld [vmem:[#allocation2 + $0x88] sm:$0x7f]
        %v570 = vlaneseq
        %v571 = vshrl.u32 %v570, 7
        %v572 = vsub.s32 1, %v571
        %v573 = vrot.slane %v496, %v572
        %v574 = vmul.f32 %v561, %v573
        %v575 = vmul.f32 %v562, %v573
        %v576 = vmul.f32 %v563, %v573
        %v577 = vmul.f32 %v564, %v573
        %v578 = vmul.f32 %v565, %v573
        %v579 = vmul.f32 %v566, %v573
        %v580 = vmul.f32 %v567, %v573
        %v581 = vadd.f32 %v554, %v574
        %v582 = vadd.f32 %v555, %v575
        %v583 = vadd.f32 %v556, %v576
        %v584 = vadd.f32 %v557, %v577
        %v585 = vadd.f32 %v558, %v578
        %v586 = vadd.f32 %v559, %v579
        %v587 = vadd.f32 %v560, %v580
        %v588 = vlaneseq
        %v589 = vshrl.u32 %v588, 7
        %v590 = vsub.s32 4, %v589
        %v591 = vrot.slane %v496, %v590
        %v592 = vmul.f32 %v562, %v591
        %v593 = vmul.f32 %v563, %v591
        %v594 = vmul.f32 %v564, %v591
        %v595 = vmul.f32 %v565, %v591
        %v596 = vmul.f32 %v566, %v591
        %v597 = vmul.f32 %v567, %v591
        %v598 = vmul.f32 %v568, %v591
        %v599 = vadd.f32 %v581, %v592
        %v600 = vadd.f32 %v582, %v593
        %v601 = vadd.f32 %v583, %v594
        %v602 = vadd.f32 %v584, %v595
        %v603 = vadd.f32 %v585, %v596
        %v604 = vadd.f32 %v586, %v597
        %v605 = vadd.f32 %v587, %v598
        %v606 = vlaneseq
        %v607 = vshrl.u32 %v606, 7
        %v608 = vsub.s32 7, %v607
        %v609 = vrot.slane %v496, %v608
        %v610 = vmul.f32 %v563, %v609
        %v611 = vmul.f32 %v564, %v609
        %v612 = vmul.f32 %v565, %v609
        %v613 = vmul.f32 %v566, %v609
        %v614 = vmul.f32 %v567, %v609
        %v615 = vmul.f32 %v568, %v609
        %v616 = vmul.f32 %v569, %v609
        %v617 = vadd.f32 %v599, %v610
        %v618 = vadd.f32 %v600, %v611
        %v619 = vadd.f32 %v601, %v612
        %v620 = vadd.f32 %v602, %v613
        %v621 = vadd.f32 %v603, %v614
        %v622 = vadd.f32 %v604, %v615
        %v623 = vadd.f32 %v605, %v616
        %v624 = vld [vmem:[#allocation2 + $0x9] sm:$0x7f]
        %v625 = vld [vmem:[#allocation2 + $0x19] sm:$0x7f]
        %v626 = vld [vmem:[#allocation2 + $0x29] sm:$0x7f]
        %v627 = vld [vmem:[#allocation2 + $0x39] sm:$0x7f]
        %v628 = vld [vmem:[#allocation2 + $0x49] sm:$0x7f]
        %v629 = vld [vmem:[#allocation2 + $0x59] sm:$0x7f]
        %v630 = vld [vmem:[#allocation2 + $0x69] sm:$0x7f]
        %v631 = vld [vmem:[#allocation2 + $0x79] sm:$0x7f]
        %v632 = vld [vmem:[#allocation2 + $0x89] sm:$0x7f]
        %v633 = vlaneseq
        %v634 = vshrl.u32 %v633, 7
        %v635 = vsub.s32 2, %v634
        %v636 = vrot.slane %v496, %v635
        %v637 = vmul.f32 %v624, %v636
        %v638 = vmul.f32 %v625, %v636
        %v639 = vmul.f32 %v626, %v636
        %v640 = vmul.f32 %v627, %v636
        %v641 = vmul.f32 %v628, %v636
        %v642 = vmul.f32 %v629, %v636
        %v643 = vmul.f32 %v630, %v636
        %v644 = vadd.f32 %v617, %v637
        %v645 = vadd.f32 %v618, %v638
        %v646 = vadd.f32 %v619, %v639
        %v647 = vadd.f32 %v620, %v640
        %v648 = vadd.f32 %v621, %v641
        %v649 = vadd.f32 %v622, %v642
        %v650 = vadd.f32 %v623, %v643
        %v651 = vlaneseq
        %v652 = vshrl.u32 %v651, 7
        %v653 = vsub.s32 5, %v652
        %v654 = vrot.slane %v496, %v653
        %v655 = vmul.f32 %v625, %v654
        %v656 = vmul.f32 %v626, %v654
        %v657 = vmul.f32 %v627, %v654
        %v658 = vmul.f32 %v628, %v654
        %v659 = vmul.f32 %v629, %v654
        %v660 = vmul.f32 %v630, %v654
        %v661 = vmul.f32 %v631, %v654
        %v662 = vadd.f32 %v644, %v655
        %v663 = vadd.f32 %v645, %v656
        %v664 = vadd.f32 %v646, %v657
        %v665 = vadd.f32 %v647, %v658
        %v666 = vadd.f32 %v648, %v659
        %v667 = vadd.f32 %v649, %v660
        %v668 = vadd.f32 %v650, %v661
        %v669 = vlaneseq
        %v670 = vshrl.u32 %v669, 7
        %v671 = vsub.s32 0, %v670
        %v672 = vrot.slane %v497, %v671
        %v673 = vmul.f32 %v626, %v672
        %v674 = vmul.f32 %v627, %v672
        %v675 = vmul.f32 %v628, %v672
        %v676 = vmul.f32 %v629, %v672
        %v677 = vmul.f32 %v630, %v672
        %v678 = vmul.f32 %v631, %v672
        %v679 = vmul.f32 %v632, %v672
        %v680 = vadd.f32 %v662, %v673
        %v681 = vadd.f32 %v663, %v674
        %v682 = vadd.f32 %v664, %v675
        %v683 = vadd.f32 %v665, %v676
        %v684 = vadd.f32 %v666, %v677
        %v685 = vadd.f32 %v667, %v678
        %v686 = vadd.f32 %v668, %v679
        %687 = vst [vmem:[%s247 + $0x8] sm:$0x7f] %v680
        %688 = vst [vmem:[%s247 + $0x18] sm:$0x7f] %v681
        %689 = vst [vmem:[%s247 + $0x28] sm:$0x7f] %v682
        %690 = vst [vmem:[%s247 + $0x38] sm:$0x7f] %v683
        %691 = vst [vmem:[%s247 + $0x48] sm:$0x7f] %v684
        %692 = vst [vmem:[%s247 + $0x58] sm:$0x7f] %v685
        %693 = vst [vmem:[%s247 + $0x68] sm:$0x7f] %v686
        %s694 = sand.u32 %s89, 1
        %s695 = sand.u32 %s89, 1
        %s696 = smul.addr %s695, 112
        %s697 = scalar_lea.vmem [#allocation5], %s696
        // Predicated region
        $region75: #{tpu_custom_call.1} parent=65 // pred_check
          %p698 = pneg %p99
        $region76: #{tpu_custom_call.1} parent=65 // pred_check_branch
          %700 = sbr.rel (%p698) target = $region78
        $region77: #{tpu_custom_call.1} parent=65 // pred_region
          %s701 = smul.u32 2, %s18
          %s702 = smul.addr %s17, 28
          %s703 = sadd.s32 %s701, %s702
          %s704 = smul.addr %s703, 8
          %s705 = scalar_lea.vmem %s2, %s704
          // Predicated region
          $region79: #{tpu_custom_call.1} parent=77 // pred_check
            _
          $region80: #{tpu_custom_call.1} parent=77 // pred_check_branch
            %707 = sbr.rel (0) target = $region82
          $region81: #{tpu_custom_call.1} parent=77 // pred_region
            // Predicated region
            $region83: #{tpu_custom_call.1} parent=81 // pred_check
              _
            $region84: #{tpu_custom_call.1} parent=81 // pred_check_branch
              %709 = sbr.rel (0) target = $region86
            $region85: #{tpu_custom_call.1} parent=81 // pred_region
              loop: start=0, step=1, limit=1
              $region87: #{tpu_custom_call.1} parent=85 // loop_pre_header
                _
              $region88: #{tpu_custom_call.1} parent=85 // loop_header
                %s711 = sphi 0, %s715
                %p712 = scmp.ge.s32.totalorder %s711, 1
                %s716 = sphi %s697, %s697
                %s717 = sphi %s705, %s705
              $region89: #{tpu_custom_call.1} parent=85 // loop_header_branch
                %714 = sbr.rel (%p712) target = $region93
              $region90: #{tpu_custom_call.1} parent=85 // loop_body
                %v718 = vld [vmem:[%s716] sm:$0xff]
                %719 = vst [vmem:[%s717] sm:$0xff] %v718
                %v720 = vld [vmem:[%s716 + $0x8] sm:$0xff]
                %721 = vst [vmem:[%s717 + $0x8] sm:$0xff] %v720
                %v722 = vld [vmem:[%s716 + $0x10] sm:$0xff]
                %723 = vst [vmem:[%s717 + $0x20] sm:$0xff] %v722
                %v724 = vld [vmem:[%s716 + $0x18] sm:$0xff]
                %725 = vst [vmem:[%s717 + $0x28] sm:$0xff] %v724
                %v726 = vld [vmem:[%s716 + $0x20] sm:$0xff]
                %727 = vst [vmem:[%s717 + $0x40] sm:$0xff] %v726
                %v728 = vld [vmem:[%s716 + $0x28] sm:$0xff]
                %729 = vst [vmem:[%s717 + $0x48] sm:$0xff] %v728
                %v730 = vld [vmem:[%s716 + $0x30] sm:$0xff]
                %731 = vst [vmem:[%s717 + $0x60] sm:$0xff] %v730
                %v732 = vld [vmem:[%s716 + $0x38] sm:$0xff]
                %733 = vst [vmem:[%s717 + $0x68] sm:$0xff] %v732
                %v734 = vld [vmem:[%s716 + $0x40] sm:$0xff]
                %735 = vst [vmem:[%s717 + $0x80] sm:$0xff] %v734
                %v736 = vld [vmem:[%s716 + $0x48] sm:$0xff]
                %737 = vst [vmem:[%s717 + $0x88] sm:$0xff] %v736
                %v738 = vld [vmem:[%s716 + $0x50] sm:$0xff]
                %739 = vst [vmem:[%s717 + $0xa0] sm:$0xff] %v738
                %v740 = vld [vmem:[%s716 + $0x58] sm:$0xff]
                %741 = vst [vmem:[%s717 + $0xa8] sm:$0xff] %v740
                %v742 = vld [vmem:[%s716 + $0x60] sm:$0xff]
                %743 = vst [vmem:[%s717 + $0xc0] sm:$0xff] %v742
                %v744 = vld [vmem:[%s716 + $0x68] sm:$0xff]
                %745 = vst [vmem:[%s717 + $0xc8] sm:$0xff] %v744
              $region91: #{tpu_custom_call.1} parent=85 // loop_footer
                %s715 = sadd.s32 1, %s711
              $region92: #{tpu_custom_call.1} parent=85 // loop_footer_branch
                %710 = sbr.rel target = $region88
              $region93: #{tpu_custom_call.1} parent=85 // loop_exit
                _
            $region86: #{tpu_custom_call.1} parent=81 // pred_fallthru
              _
            // Predicated region
            $region94: #{tpu_custom_call.1} parent=81 // pred_check
              _
            $region95: #{tpu_custom_call.1} parent=81 // pred_check_branch
              %747 = sbr.rel target = $region97
            $region96: #{tpu_custom_call.1} parent=81 // pred_region
              _
            $region97: #{tpu_custom_call.1} parent=81 // pred_fallthru
              _
          $region82: #{tpu_custom_call.1} parent=77 // pred_fallthru
            _
          %748 = vnop
        $region78: #{tpu_custom_call.1} parent=65 // pred_fallthru
          _
      $region66: #{tpu_custom_call.1} parent=5 // pred_fallthru
        _
      %p749 = scmp.le.s32.totalorder 2, %s8
      // Predicated region
      $region98: #{tpu_custom_call.1} parent=5 // pred_check
        %p750 = pneg %p749
      $region99: #{tpu_custom_call.1} parent=5 // pred_check_branch
        %752 = sbr.rel (%p750) target = $region101
      $region100: #{tpu_custom_call.1} parent=5 // pred_region
        %s753 = ssub.s32 %s8, 2
        // Predicated region
        $region102: #{tpu_custom_call.1} parent=100 // pred_check
          %p754 = pneg %p105
        $region103: #{tpu_custom_call.1} parent=100 // pred_check_branch
          %756 = sbr.rel (%p754) target = $region105
        $region104: #{tpu_custom_call.1} parent=100 // pred_region
          %s757 = sand.u32 %s90, 1
          %s758 = sand.u32 %s90, 1
          %s759 = smul.addr %s758, 112
          %s760 = scalar_lea.vmem [#allocation5], %s759
        $region105: #{tpu_custom_call.1} parent=100 // pred_fallthru
          _
      $region101: #{tpu_custom_call.1} parent=5 // pred_fallthru
        _
    $region6: #{tpu_custom_call.1} parent=1 // loop_footer
      %s12 = sadd.s32 1, %s8
    $region7: #{tpu_custom_call.1} parent=1 // loop_footer_branch
      %7 = sbr.rel target = $region3
    $region8: #{tpu_custom_call.1} parent=1 // loop_exit
      _

</llo_original>
